<compile_context>
chip_gen: v7x
topology: tpu7x:2x2x1
jax: 0.10.0
libtpu: 0.0.40
codegen_flags: <defaults>
</compile_context>

<pallas_src>
import jax
import jax.numpy as jnp
from jax import lax
from jax.experimental import pallas as pl
from jax.experimental.pallas import tpu as pltpu

LANE = 128
SUBLANE = 8


def _round_up(x, m):
    return (x + m - 1) // m * m


def mlp_kernel(tok_ref, m_ref, b1_ref, w2_ref, b2_ref, o_ref):
    """One batch tile (batch on the lane axis).

    tok_ref : (seq, TB)             int32   tokens, transposed (batch = lanes)
    m_ref   : (H_pad, seq*vocab_p)  bf16    folded  (emb @ W1_block)^T  table
    b1_ref  : (H_pad, 1)            f32
    w2_ref  : (O_pad8, H_pad)       bf16
    b2_ref  : (O_pad8, 1)           f32
    o_ref   : (O_pad8, TB)          f32     output, transposed (batch = lanes)
    """
    seq, tb = tok_ref.shape
    h_pad, kdim = m_ref.shape
    vocab_p = kdim // seq

    tok = tok_ref[...]                                            # (seq, TB) int32
    vidx = lax.broadcasted_iota(jnp.int32, (vocab_p, tb), 0)      # vocab id per sublane

    # Transposed multi-hot selector (seq*vocab_p, TB): row t*vocab_p + v is
    # [tok[b, t] == v].  Compare + cast only (no f32 select) -- cheapest VPU form.
    hot = jnp.concatenate(
        [(tok[t:t + 1, :] == vidx).astype(jnp.bfloat16) for t in range(seq)],
        axis=0)                                                   # (seq*vocab_p, TB) bf16

    # Fused embedding-gather + Linear1 as ONE K=seq*vocab_p MXU matmul, f32 accumulate.
    h = jnp.dot(m_ref[...], hot, preferred_element_type=jnp.float32)   # (H_pad, TB)
    h = jnp.maximum(h + b1_ref[...], 0.0)                         # bias + ReLU in f32

    out = jnp.dot(w2_ref[...], h.astype(jnp.bfloat16),
                  preferred_element_type=jnp.float32) + b2_ref[...]    # (O_pad8, TB)
    o_ref[...] = out.astype(o_ref.dtype)                          # lane-dense slim store


def prepare_params(emb_table, w1, b1, w2, b2, *, seq_len=5):
    """One-time weight prep (hoisted out of the per-call forward path).

    PyTorch-convention params: emb_table (V, E), w1 (H, 5E), b1 (H,), w2 (O, H), b2 (O,).
    Returns kernel-layout, padded weights with the embedding folded into Linear1.
    """
    vocab, emb_dim = emb_table.shape
    hidden, d_in = w1.shape
    out_dim = w2.shape[0]
    assert d_in == seq_len * emb_dim

    vocab_p = _round_up(vocab, LANE)          # vocab sits on the contraction axis (128-aligned)
    h_pad = _round_up(hidden, LANE)
    o_pad8 = _round_up(out_dim, SUBLANE)      # output classes live on sublanes (transposed out)

    # TODO(synk): for large vocabularies the folded table (seq*vocab_p*H_pad*2 B, held fully
    # VMEM-resident) and the O(B*V*H) one-hot FLOPs stop scaling; switch to a vocab-tiled
    # ('arbitrary' grid axis) or scalar-prefetch/DMA gather path instead of the fold.
    assert seq_len * vocab_p * h_pad * 2 <= 8 * 1024 * 1024, (
        "folded embedding/Linear1 table too large for the VMEM-resident one-hot path")

    w1_t = jnp.transpose(w1).astype(jnp.float32)                  # (5E, H)
    emb_f32 = emb_table.astype(jnp.float32)
    # Fold embedding into Linear1 per token position:  M[t] = emb @ W1_block_t   (V, H)
    m = jnp.stack(
        [emb_f32 @ w1_t[t * emb_dim:(t + 1) * emb_dim, :] for t in range(seq_len)],
        axis=0)                                                   # (seq, V, H)
    m = jnp.pad(m, ((0, 0), (0, vocab_p - vocab), (0, h_pad - hidden)))
    m_t = jnp.transpose(m.reshape(seq_len * vocab_p, h_pad))      # (H_pad, seq*vocab_p)

    w2_p = jnp.pad(w2, ((0, o_pad8 - out_dim), (0, h_pad - hidden)))   # (O_pad8, H_pad)

    return {
        "m_t": m_t.astype(jnp.bfloat16),
        "b1": jnp.pad(b1, (0, h_pad - hidden)).reshape(h_pad, 1).astype(jnp.float32),
        "w2": w2_p.astype(jnp.bfloat16),
        "b2": jnp.pad(b2, (0, o_pad8 - out_dim)).reshape(o_pad8, 1).astype(jnp.float32),
        "out_dim": out_dim,
        "seq_len": seq_len,
    }


def mlp_classifier_forward(tokens, params, *, block_batch=1024):
    """Forward pass equivalent to the PyTorch MLPClassifier (bf16 MXU, f32 accumulate)."""
    m_t, b1, w2, b2 = params["m_t"], params["b1"], params["w2"], params["b2"]
    out_dim, seq = params["out_dim"], params["seq_len"]
    b, s = tokens.shape
    assert s == seq
    h_pad, kdim = m_t.shape
    o_pad8 = w2.shape[0]

    # Batch tile: large (amortizes ~0.35us/grid-step overhead), multiple of 128 lanes,
    # capped at ceil(B/2) so any non-tiny batch yields a grid of >= 2 parallel steps
    # (both TensorCores on v7x; harmless elsewhere).
    tb = min(_round_up(block_batch, LANE), _round_up(pl.cdiv(b, 2), LANE))
    tb = max(tb, LANE)
    b_pad = _round_up(b, tb)
    grid = (b_pad // tb,)

    # Tokens enter transposed: (seq, B_pad) int32, batch on the lane axis.
    tokens_t = jnp.transpose(
        jnp.pad(tokens.astype(jnp.int32), ((0, b_pad - b), (0, 0))))      # (seq, b_pad)

    flops = 2 * b_pad * (kdim * h_pad + h_pad * o_pad8)
    bytes_accessed = (int(tokens_t.size) * 4 + int(m_t.size) * 2 + int(w2.size) * 2
                      + int(b1.size) * 4 + int(b2.size) * 4 + o_pad8 * b_pad * 4)

    out_t = pl.pallas_call(
        mlp_kernel,
        out_shape=jax.ShapeDtypeStruct((o_pad8, b_pad), jnp.float32),
        grid=grid,
        in_specs=[
            pl.BlockSpec((seq, tb), lambda i: (0, i)),        # tokens: batch-tiled (lanes)
            pl.BlockSpec((h_pad, kdim), lambda i: (0, 0)),    # folded table: VMEM-resident
            pl.BlockSpec((h_pad, 1), lambda i: (0, 0)),       # b1
            pl.BlockSpec((o_pad8, h_pad), lambda i: (0, 0)),  # W2
            pl.BlockSpec((o_pad8, 1), lambda i: (0, 0)),      # b2
        ],
        out_specs=pl.BlockSpec((o_pad8, tb), lambda i: (0, i)),
        compiler_params=pltpu.CompilerParams(
            dimension_semantics=("parallel",)),
        cost_estimate=pl.CostEstimate(
            flops=flops, transcendentals=0, bytes_accessed=bytes_accessed),
    )(tokens_t, m_t, b1, w2, b2)

    # Slice real classes / rows back out and un-transpose (tiny wrapper op).
    return jnp.transpose(out_t[:out_dim, :b])


if __name__ == "__main__":
    # Small, deterministic configuration (forward implies a fixed seq len of 5).
    vocab_size = 128
    embedding_dim = 16
    hidden_dim = 32
    output_dim = 4
    seq_len = 5
    batch = 16

    key = jax.random.PRNGKey(0)
    k_tok, k_emb, k_w1, k_b1, k_w2, k_b2 = jax.random.split(key, 6)

    tokens = jax.random.randint(k_tok, (batch, seq_len), 0, vocab_size, dtype=jnp.int32)

    # Deterministic parameter init (shapes follow nn.Embedding / nn.Linear).
    emb_table = jax.random.normal(k_emb, (vocab_size, embedding_dim), jnp.float32) * 0.1
    d_in = embedding_dim * seq_len
    w1 = jax.random.normal(k_w1, (hidden_dim, d_in), jnp.float32) * (1.0 / jnp.sqrt(d_in))
    b1 = jax.random.normal(k_b1, (hidden_dim,), jnp.float32) * 0.01
    w2 = jax.random.normal(k_w2, (output_dim, hidden_dim), jnp.float32) * (1.0 / jnp.sqrt(hidden_dim))
    b2 = jax.random.normal(k_b2, (output_dim,), jnp.float32) * 0.01

    params = prepare_params(emb_table, w1, b1, w2, b2, seq_len=seq_len)
    out = mlp_classifier_forward(tokens, params)
    out = jax.block_until_ready(out)

    # Pure-JAX f32 reference. bf16 matmul inputs + folded table -> loosened tolerance.
    flat_ref = emb_table[tokens].reshape(batch, -1)
    ref = jnp.maximum(flat_ref @ w1.T + b1, 0.0) @ w2.T + b2
    assert out.shape == (batch, output_dim)
    assert jnp.allclose(out, ref, atol=2e-2, rtol=2e-2), float(jnp.max(jnp.abs(out - ref)))

    print("KERNEL_OK")
</pallas_src>

<mosaic_0001>
module attributes {stable_mosaic.version = 11 : i64} {
  func.func @mlp_kernel(%arg0: i32, %arg1: memref<5x128xi32, #tpu.memory_space<vmem>>, %arg2: memref<128x640xbf16, #tpu.memory_space<vmem>>, %arg3: memref<128x1xf32, #tpu.memory_space<vmem>>, %arg4: memref<8x128xbf16, #tpu.memory_space<vmem>>, %arg5: memref<8x1xf32, #tpu.memory_space<vmem>>, %arg6: memref<8x128xf32, #tpu.memory_space<vmem>>) attributes {dimension_semantics = [#tpu.dimension_semantics<parallel>], iteration_bounds = array<i64: 1>, scalar_prefetch = 0 : i64, scratch_operands = 0 : i64, tpu.core_type = #tpu.core_type<tc>, window_params = [{transform_indices = @transform_0, window_bounds = array<i64: 5, 128>}, {pipeline_mode = #tpu.pipeline_mode<synchronous>, transform_indices = @transform_1, window_bounds = array<i64: 128, 640>}, {pipeline_mode = #tpu.pipeline_mode<synchronous>, transform_indices = @transform_2, window_bounds = array<i64: 128, 1>}, {pipeline_mode = #tpu.pipeline_mode<synchronous>, transform_indices = @transform_3, window_bounds = array<i64: 8, 128>}, {pipeline_mode = #tpu.pipeline_mode<synchronous>, transform_indices = @transform_4, window_bounds = array<i64: 8, 1>}, {transform_indices = @transform_5, window_bounds = array<i64: 8, 128>}]} {
    %c0 = arith.constant 0 : index
    %c0_0 = arith.constant 0 : index
    %0 = vector.load %arg1[%c0, %c0_0] : memref<5x128xi32, #tpu.memory_space<vmem>>, vector<5x128xi32>
    %1 = tpu.iota {dimensions = array<i32: 0>} : vector<128x128xi32>
    %2 = vector.extract_strided_slice %0 {offsets = [0, 0], sizes = [1, 128], strides = [1, 1]} : vector<5x128xi32> to vector<1x128xi32>
    %3 = vector.broadcast %2 : vector<1x128xi32> to vector<128x128xi32>
    %4 = arith.cmpi eq, %3, %1 : vector<128x128xi32>
    %5 = arith.extui %4 : vector<128x128xi1> to vector<128x128xi32>
    %6 = arith.sitofp %5 : vector<128x128xi32> to vector<128x128xf32>
    %7 = arith.truncf %6 : vector<128x128xf32> to vector<128x128xbf16>
    %8 = vector.extract_strided_slice %0 {offsets = [1, 0], sizes = [1, 128], strides = [1, 1]} : vector<5x128xi32> to vector<1x128xi32>
    %9 = vector.broadcast %8 : vector<1x128xi32> to vector<128x128xi32>
    %10 = arith.cmpi eq, %9, %1 : vector<128x128xi32>
    %11 = arith.extui %10 : vector<128x128xi1> to vector<128x128xi32>
    %12 = arith.sitofp %11 : vector<128x128xi32> to vector<128x128xf32>
    %13 = arith.truncf %12 : vector<128x128xf32> to vector<128x128xbf16>
    %14 = vector.extract_strided_slice %0 {offsets = [2, 0], sizes = [1, 128], strides = [1, 1]} : vector<5x128xi32> to vector<1x128xi32>
    %15 = vector.broadcast %14 : vector<1x128xi32> to vector<128x128xi32>
    %16 = arith.cmpi eq, %15, %1 : vector<128x128xi32>
    %17 = arith.extui %16 : vector<128x128xi1> to vector<128x128xi32>
    %18 = arith.sitofp %17 : vector<128x128xi32> to vector<128x128xf32>
    %19 = arith.truncf %18 : vector<128x128xf32> to vector<128x128xbf16>
    %20 = vector.extract_strided_slice %0 {offsets = [3, 0], sizes = [1, 128], strides = [1, 1]} : vector<5x128xi32> to vector<1x128xi32>
    %21 = vector.broadcast %20 : vector<1x128xi32> to vector<128x128xi32>
    %22 = arith.cmpi eq, %21, %1 : vector<128x128xi32>
    %23 = arith.extui %22 : vector<128x128xi1> to vector<128x128xi32>
    %24 = arith.sitofp %23 : vector<128x128xi32> to vector<128x128xf32>
    %25 = arith.truncf %24 : vector<128x128xf32> to vector<128x128xbf16>
    %26 = vector.extract_strided_slice %0 {offsets = [4, 0], sizes = [1, 128], strides = [1, 1]} : vector<5x128xi32> to vector<1x128xi32>
    %27 = vector.broadcast %26 : vector<1x128xi32> to vector<128x128xi32>
    %28 = arith.cmpi eq, %27, %1 : vector<128x128xi32>
    %29 = arith.extui %28 : vector<128x128xi1> to vector<128x128xi32>
    %30 = arith.sitofp %29 : vector<128x128xi32> to vector<128x128xf32>
    %31 = arith.truncf %30 : vector<128x128xf32> to vector<128x128xbf16>
    %32 = tpu.concatenate %7, %13, %19, %25, %31 in 0 : vector<128x128xbf16>, vector<128x128xbf16>, vector<128x128xbf16>, vector<128x128xbf16>, vector<128x128xbf16> -> vector<640x128xbf16>
    %c0_1 = arith.constant 0 : index
    %c0_2 = arith.constant 0 : index
    %33 = vector.load %arg2[%c0_1, %c0_2] : memref<128x640xbf16, #tpu.memory_space<vmem>>, vector<128x640xbf16>
    %cst = arith.constant dense<0.000000e+00> : vector<128x128xf32>
    %34 = tpu.matmul %33, %32, %cst {dimension_numbers = #tpu.dot_dimension_numbers<[1], [0], [0], [1], [0, 0, 1, 1], [], []>} : vector<128x640xbf16>, vector<640x128xbf16>, vector<128x128xf32> -> vector<128x128xf32>
    %c0_3 = arith.constant 0 : index
    %c0_4 = arith.constant 0 : index
    %35 = vector.load %arg3[%c0_3, %c0_4] : memref<128x1xf32, #tpu.memory_space<vmem>>, vector<128x1xf32>
    %36 = vector.broadcast %35 : vector<128x1xf32> to vector<128x128xf32>
    %37 = arith.addf %34, %36 : vector<128x128xf32>
    %cst_5 = arith.constant 0.000000e+00 : f32
    %38 = vector.broadcast %cst_5 : f32 to vector<128x128xf32>
    %39 = arith.maximumf %37, %38 : vector<128x128xf32>
    %c0_6 = arith.constant 0 : index
    %c0_7 = arith.constant 0 : index
    %40 = vector.load %arg4[%c0_6, %c0_7] : memref<8x128xbf16, #tpu.memory_space<vmem>>, vector<8x128xbf16>
    %41 = arith.truncf %39 : vector<128x128xf32> to vector<128x128xbf16>
    %cst_8 = arith.constant dense<0.000000e+00> : vector<8x128xf32>
    %42 = tpu.matmul %40, %41, %cst_8 {dimension_numbers = #tpu.dot_dimension_numbers<[1], [0], [0], [1], [0, 0, 1, 1], [], []>} : vector<8x128xbf16>, vector<128x128xbf16>, vector<8x128xf32> -> vector<8x128xf32>
    %c0_9 = arith.constant 0 : index
    %c0_10 = arith.constant 0 : index
    %43 = vector.load %arg5[%c0_9, %c0_10] : memref<8x1xf32, #tpu.memory_space<vmem>>, vector<8x1xf32>
    %44 = vector.broadcast %43 : vector<8x1xf32> to vector<8x128xf32>
    %45 = arith.addf %42, %44 : vector<8x128xf32>
    %c0_11 = arith.constant 0 : index
    %c0_12 = arith.constant 0 : index
    %46 = vector.load %arg6[%c0_11, %c0_12] : memref<8x128xf32, #tpu.memory_space<vmem>>, vector<8x128xf32>
    tpu.vector_store %arg6[%c0_11, %c0_12], %45 {strides = array<i32>} : memref<8x128xf32, #tpu.memory_space<vmem>>, vector<8x128xf32>,
    return
  }
  func.func @transform_0(%arg0: i32) -> (i32, i32) {
    %c0_i32 = arith.constant 0 : i32
    %c0_i32_0 = arith.constant 0 : i32
    return %c0_i32, %arg0 : i32, i32
  }
  func.func @transform_1(%arg0: i32) -> (i32, i32) {
    %c0_i32 = arith.constant 0 : i32
    %c0_i32_0 = arith.constant 0 : i32
    %c0_i32_1 = arith.constant 0 : i32
    return %c0_i32, %c0_i32_0 : i32, i32
  }
  func.func @transform_2(%arg0: i32) -> (i32, i32) {
    %c0_i32 = arith.constant 0 : i32
    %c0_i32_0 = arith.constant 0 : i32
    %c0_i32_1 = arith.constant 0 : i32
    return %c0_i32, %c0_i32_0 : i32, i32
  }
  func.func @transform_3(%arg0: i32) -> (i32, i32) {
    %c0_i32 = arith.constant 0 : i32
    %c0_i32_0 = arith.constant 0 : i32
    %c0_i32_1 = arith.constant 0 : i32
    return %c0_i32, %c0_i32_0 : i32, i32
  }
  func.func @transform_4(%arg0: i32) -> (i32, i32) {
    %c0_i32 = arith.constant 0 : i32
    %c0_i32_0 = arith.constant 0 : i32
    %c0_i32_1 = arith.constant 0 : i32
    return %c0_i32, %c0_i32_0 : i32, i32
  }
  func.func @transform_5(%arg0: i32) -> (i32, i32) {
    %c0_i32 = arith.constant 0 : i32
    %c0_i32_0 = arith.constant 0 : i32
    return %c0_i32, %arg0 : i32, i32
  }
}

</mosaic_0001>

<llo_original>
// kernel: tpu_custom_call.1
$region0: #{tpu_custom_call.1}
  #allocation0 [shape = 'u32[]', space=smem, size = 0x4, offset = 0x4, fixed_abs, tag = 'smem constant byte address 0x4 - core index']
  #allocation1 [shape = 'u32[144,128]{1,0:T(1,128)}', space=vmem, size = 0x12000, scoped, tag = 'internal scratch']
  %s0 = inlined_call_operand.vmem [shape: s32[5,128], index: 0, kind: input, shape index: {}]
  %s1 = inlined_call_operand.hbm [shape: bf16[128,640], index: 1, kind: input, shape index: {}]
  %s2 = inlined_call_operand.vmem [shape: f32[128,1], index: 2, kind: input, shape index: {}]
  %s3 = inlined_call_operand.vmem [shape: bf16[8,128], index: 3, kind: input, shape index: {}]
  %s4 = inlined_call_operand.vmem [shape: f32[8,1], index: 4, kind: input, shape index: {}]
  %s5 = inlined_call_operand.hbm [shape: f32[8,128], index: 5, kind: output, shape index: {}]
  %s6 = sld [smem:[#allocation0]]
  $region34: #{tpu_custom_call.1} parent=0
    _
  %s8 = ssub.s32 1, %s6
  %s9 = scalar_select 0, %s8, %s6
  $region1: #{tpu_custom_call.1} parent=0
    #allocation2 [shape = 'u8[163840]{0}', space=vmem, size = 0x28000, scoped, tag = 'input window, operand 1, single buffered']
    #allocation3 [shape = 's32[1]{0}', space=sflag, size = 0x4, scoped, tag = 'scoped memory for tpu_custom_call.1']
    #allocation4 [shape = 's32[1]{0}', space=sflag, size = 0x4, scoped, tag = 'scoped memory for tpu_custom_call.1']
    #allocation5 [shape = 'u8[4096]{0}', space=vmem, size = 0x1000, scoped, tag = 'output window, operand 0, single buffered']
    %10 = vsyncpa [#allocation3], 0
    %11 = vsyncpa [#allocation4], 0
    // Predicated region
    $region2: #{tpu_custom_call.1} parent=1 // pred_check
      _
    $region3: #{tpu_custom_call.1} parent=1 // pred_check_branch
      %13 = sbr.rel (0) target = $region5
    $region4: #{tpu_custom_call.1} parent=1 // pred_region
      _
    $region5: #{tpu_custom_call.1} parent=1 // pred_fallthru
      _
    // Predicated region
    $region6: #{tpu_custom_call.1} parent=1 // pred_check
      _
    $region7: #{tpu_custom_call.1} parent=1 // pred_check_branch
      %15 = sbr.rel (0) target = $region9
    $region8: #{tpu_custom_call.1} parent=1 // pred_region
      %s17 = ssub.s32 5120, 5120
      %18 = vsyncadd [#allocation3], %s17
      %s19 = sshll.u32 [#allocation2], 4
      %s20 = int_to_ptr.vmem [resolvable:$true] %s19
      %25 = dma.hbm_to_vmem [thread:$0]  %s1, 5120, %s20, [#allocation3], 320, 320, 20
    $region9: #{tpu_custom_call.1} parent=1 // pred_fallthru
      _
    // Predicated region
    $region10: #{tpu_custom_call.1} parent=1 // pred_check
      _
    $region11: #{tpu_custom_call.1} parent=1 // pred_check_branch
      %27 = sbr.rel (0) target = $region13
    $region12: #{tpu_custom_call.1} parent=1 // pred_region
      _
    $region13: #{tpu_custom_call.1} parent=1 // pred_fallthru
      _
    // Predicated region
    $region14: #{tpu_custom_call.1} parent=1 // pred_check
      _
    $region15: #{tpu_custom_call.1} parent=1 // pred_check_branch
      %29 = sbr.rel (0) target = $region17
    $region16: #{tpu_custom_call.1} parent=1 // pred_region
      _
    $region17: #{tpu_custom_call.1} parent=1 // pred_fallthru
      _
    // Predicated region
    $region18: #{tpu_custom_call.1} parent=1 // pred_check
      _
    $region19: #{tpu_custom_call.1} parent=1 // pred_check_branch
      %31 = sbr.rel (0) target = $region21
    $region20: #{tpu_custom_call.1} parent=1 // pred_region
      _
    $region21: #{tpu_custom_call.1} parent=1 // pred_fallthru
      _
    // Predicated region
    $region22: #{tpu_custom_call.1} parent=1 // pred_check
      _
    $region23: #{tpu_custom_call.1} parent=1 // pred_check_branch
      %33 = sbr.rel (0) target = $region25
    $region24: #{tpu_custom_call.1} parent=1 // pred_region
      %34 = dma.done [#allocation3], 5120
    $region25: #{tpu_custom_call.1} parent=1 // pred_fallthru
      _
    %v36 = vld [vmem:[%s0] sm:$0x1f]
    %v37 = vlaneseq
    %v38 = vshrl.u32 %v37, 7
    %v39 = vadd.s32 %v38, 8
    %v40 = vadd.s32 %v38, 16
    %v41 = vadd.s32 %v38, 24
    %v42 = vadd.s32 %v38, 32
    %v43 = vadd.s32 %v38, 40
    %v44 = vadd.s32 %v38, 48
    %v45 = vadd.s32 %v38, 56
    %v46 = vadd.s32 %v38, 64
    %v47 = vadd.s32 %v38, 72
    %v48 = vadd.s32 %v38, 80
    %v49 = vadd.s32 %v38, 88
    %v50 = vadd.s32 %v38, 96
    %v51 = vadd.s32 %v38, 104
    %v52 = vadd.s32 %v38, 112
    %v53 = vadd.s32 %v38, 120
    %v54 = vlaneseq
    %v55 = vshrl.u32 %v54, 7
    %v56 = vsub.s32 0, %v55
    %v57 = vrot.slane %v36, %v56
    %vm58 = vcmp.eq.s32.totalorder %v57, %v38
    %vm59 = vcmp.eq.s32.totalorder %v57, %v39
    %vm60 = vcmp.eq.s32.totalorder %v57, %v40
    %vm61 = vcmp.eq.s32.totalorder %v57, %v41
    %vm62 = vcmp.eq.s32.totalorder %v57, %v42
    %vm63 = vcmp.eq.s32.totalorder %v57, %v43
    %vm64 = vcmp.eq.s32.totalorder %v57, %v44
    %vm65 = vcmp.eq.s32.totalorder %v57, %v45
    %vm66 = vcmp.eq.s32.totalorder %v57, %v46
    %vm67 = vcmp.eq.s32.totalorder %v57, %v47
    %vm68 = vcmp.eq.s32.totalorder %v57, %v48
    %vm69 = vcmp.eq.s32.totalorder %v57, %v49
    %vm70 = vcmp.eq.s32.totalorder %v57, %v50
    %vm71 = vcmp.eq.s32.totalorder %v57, %v51
    %vm72 = vcmp.eq.s32.totalorder %v57, %v52
    %vm73 = vcmp.eq.s32.totalorder %v57, %v53
    %v74 = vsel %vm58, 1, 0
    %v75 = vsel %vm59, 1, 0
    %v76 = vsel %vm60, 1, 0
    %v77 = vsel %vm61, 1, 0
    %v78 = vsel %vm62, 1, 0
    %v79 = vsel %vm63, 1, 0
    %v80 = vsel %vm64, 1, 0
    %v81 = vsel %vm65, 1, 0
    %v82 = vsel %vm66, 1, 0
    %v83 = vsel %vm67, 1, 0
    %v84 = vsel %vm68, 1, 0
    %v85 = vsel %vm69, 1, 0
    %v86 = vsel %vm70, 1, 0
    %v87 = vsel %vm71, 1, 0
    %v88 = vsel %vm72, 1, 0
    %v89 = vsel %vm73, 1, 0
    %v90 = vcvt.s32.f32 %v74
    %v91 = vcvt.s32.f32 %v75
    %v92 = vcvt.s32.f32 %v76
    %v93 = vcvt.s32.f32 %v77
    %v94 = vcvt.s32.f32 %v78
    %v95 = vcvt.s32.f32 %v79
    %v96 = vcvt.s32.f32 %v80
    %v97 = vcvt.s32.f32 %v81
    %v98 = vcvt.s32.f32 %v82
    %v99 = vcvt.s32.f32 %v83
    %v100 = vcvt.s32.f32 %v84
    %v101 = vcvt.s32.f32 %v85
    %v102 = vcvt.s32.f32 %v86
    %v103 = vcvt.s32.f32 %v87
    %v104 = vcvt.s32.f32 %v88
    %v105 = vcvt.s32.f32 %v89
    %v106 = vpack.c.bf16 %v91, %v90
    %v107 = vpack.c.bf16 %v93, %v92
    %v108 = vpack.c.bf16 %v95, %v94
    %v109 = vpack.c.bf16 %v97, %v96
    %v110 = vpack.c.bf16 %v99, %v98
    %v111 = vpack.c.bf16 %v101, %v100
    %v112 = vpack.c.bf16 %v103, %v102
    %v113 = vpack.c.bf16 %v105, %v104
    %v114 = vlaneseq
    %v115 = vshrl.u32 %v114, 7
    %v116 = vsub.s32 1, %v115
    %v117 = vrot.slane %v36, %v116
    %vm118 = vcmp.eq.s32.totalorder %v117, %v38
    %vm119 = vcmp.eq.s32.totalorder %v117, %v39
    %vm120 = vcmp.eq.s32.totalorder %v117, %v40
    %vm121 = vcmp.eq.s32.totalorder %v117, %v41
    %vm122 = vcmp.eq.s32.totalorder %v117, %v42
    %vm123 = vcmp.eq.s32.totalorder %v117, %v43
    %vm124 = vcmp.eq.s32.totalorder %v117, %v44
    %vm125 = vcmp.eq.s32.totalorder %v117, %v45
    %vm126 = vcmp.eq.s32.totalorder %v117, %v46
    %vm127 = vcmp.eq.s32.totalorder %v117, %v47
    %vm128 = vcmp.eq.s32.totalorder %v117, %v48
    %vm129 = vcmp.eq.s32.totalorder %v117, %v49
    %vm130 = vcmp.eq.s32.totalorder %v117, %v50
    %vm131 = vcmp.eq.s32.totalorder %v117, %v51
    %vm132 = vcmp.eq.s32.totalorder %v117, %v52
    %vm133 = vcmp.eq.s32.totalorder %v117, %v53
    %v134 = vsel %vm118, 1, 0
    %v135 = vsel %vm119, 1, 0
    %v136 = vsel %vm120, 1, 0
    %v137 = vsel %vm121, 1, 0
    %v138 = vsel %vm122, 1, 0
    %v139 = vsel %vm123, 1, 0
    %v140 = vsel %vm124, 1, 0
    %v141 = vsel %vm125, 1, 0
    %v142 = vsel %vm126, 1, 0
    %v143 = vsel %vm127, 1, 0
    %v144 = vsel %vm128, 1, 0
    %v145 = vsel %vm129, 1, 0
    %v146 = vsel %vm130, 1, 0
    %v147 = vsel %vm131, 1, 0
    %v148 = vsel %vm132, 1, 0
    %v149 = vsel %vm133, 1, 0
    %v150 = vcvt.s32.f32 %v134
    %v151 = vcvt.s32.f32 %v135
    %v152 = vcvt.s32.f32 %v136
    %v153 = vcvt.s32.f32 %v137
    %v154 = vcvt.s32.f32 %v138
    %v155 = vcvt.s32.f32 %v139
    %v156 = vcvt.s32.f32 %v140
    %v157 = vcvt.s32.f32 %v141
    %v158 = vcvt.s32.f32 %v142
    %v159 = vcvt.s32.f32 %v143
    %v160 = vcvt.s32.f32 %v144
    %v161 = vcvt.s32.f32 %v145
    %v162 = vcvt.s32.f32 %v146
    %v163 = vcvt.s32.f32 %v147
    %v164 = vcvt.s32.f32 %v148
    %v165 = vcvt.s32.f32 %v149
    %v166 = vpack.c.bf16 %v151, %v150
    %v167 = vpack.c.bf16 %v153, %v152
    %v168 = vpack.c.bf16 %v155, %v154
    %v169 = vpack.c.bf16 %v157, %v156
    %v170 = vpack.c.bf16 %v159, %v158
    %v171 = vpack.c.bf16 %v161, %v160
    %v172 = vpack.c.bf16 %v163, %v162
    %v173 = vpack.c.bf16 %v165, %v164
    %v174 = vlaneseq
    %v175 = vshrl.u32 %v174, 7
    %v176 = vsub.s32 2, %v175
    %v177 = vrot.slane %v36, %v176
    %vm178 = vcmp.eq.s32.totalorder %v177, %v38
    %vm179 = vcmp.eq.s32.totalorder %v177, %v39
    %vm180 = vcmp.eq.s32.totalorder %v177, %v40
    %vm181 = vcmp.eq.s32.totalorder %v177, %v41
    %vm182 = vcmp.eq.s32.totalorder %v177, %v42
    %vm183 = vcmp.eq.s32.totalorder %v177, %v43
    %vm184 = vcmp.eq.s32.totalorder %v177, %v44
    %vm185 = vcmp.eq.s32.totalorder %v177, %v45
    %vm186 = vcmp.eq.s32.totalorder %v177, %v46
    %vm187 = vcmp.eq.s32.totalorder %v177, %v47
    %vm188 = vcmp.eq.s32.totalorder %v177, %v48
    %vm189 = vcmp.eq.s32.totalorder %v177, %v49
    %vm190 = vcmp.eq.s32.totalorder %v177, %v50
    %vm191 = vcmp.eq.s32.totalorder %v177, %v51
    %vm192 = vcmp.eq.s32.totalorder %v177, %v52
    %vm193 = vcmp.eq.s32.totalorder %v177, %v53
    %v194 = vsel %vm178, 1, 0
    %v195 = vsel %vm179, 1, 0
    %v196 = vsel %vm180, 1, 0
    %v197 = vsel %vm181, 1, 0
    %v198 = vsel %vm182, 1, 0
    %v199 = vsel %vm183, 1, 0
    %v200 = vsel %vm184, 1, 0
    %v201 = vsel %vm185, 1, 0
    %v202 = vsel %vm186, 1, 0
    %v203 = vsel %vm187, 1, 0
    %v204 = vsel %vm188, 1, 0
    %v205 = vsel %vm189, 1, 0
    %v206 = vsel %vm190, 1, 0
    %v207 = vsel %vm191, 1, 0
    %v208 = vsel %vm192, 1, 0
    %v209 = vsel %vm193, 1, 0
    %v210 = vcvt.s32.f32 %v194
    %v211 = vcvt.s32.f32 %v195
    %v212 = vcvt.s32.f32 %v196
    %v213 = vcvt.s32.f32 %v197
    %v214 = vcvt.s32.f32 %v198
    %v215 = vcvt.s32.f32 %v199
    %v216 = vcvt.s32.f32 %v200
    %v217 = vcvt.s32.f32 %v201
    %v218 = vcvt.s32.f32 %v202
    %v219 = vcvt.s32.f32 %v203
    %v220 = vcvt.s32.f32 %v204
    %v221 = vcvt.s32.f32 %v205
    %v222 = vcvt.s32.f32 %v206
    %v223 = vcvt.s32.f32 %v207
    %v224 = vcvt.s32.f32 %v208
    %v225 = vcvt.s32.f32 %v209
    %v226 = vpack.c.bf16 %v211, %v210
    %v227 = vpack.c.bf16 %v213, %v212
    %v228 = vpack.c.bf16 %v215, %v214
    %v229 = vpack.c.bf16 %v217, %v216
    %v230 = vpack.c.bf16 %v219, %v218
    %v231 = vpack.c.bf16 %v221, %v220
    %v232 = vpack.c.bf16 %v223, %v222
    %v233 = vpack.c.bf16 %v225, %v224
    %v234 = vlaneseq
    %v235 = vshrl.u32 %v234, 7
    %v236 = vsub.s32 3, %v235
    %v237 = vrot.slane %v36, %v236
    %vm238 = vcmp.eq.s32.totalorder %v237, %v38
    %vm239 = vcmp.eq.s32.totalorder %v237, %v39
    %vm240 = vcmp.eq.s32.totalorder %v237, %v40
    %vm241 = vcmp.eq.s32.totalorder %v237, %v41
    %vm242 = vcmp.eq.s32.totalorder %v237, %v42
    %vm243 = vcmp.eq.s32.totalorder %v237, %v43
    %vm244 = vcmp.eq.s32.totalorder %v237, %v44
    %vm245 = vcmp.eq.s32.totalorder %v237, %v45
    %vm246 = vcmp.eq.s32.totalorder %v237, %v46
    %vm247 = vcmp.eq.s32.totalorder %v237, %v47
    %vm248 = vcmp.eq.s32.totalorder %v237, %v48
    %vm249 = vcmp.eq.s32.totalorder %v237, %v49
    %vm250 = vcmp.eq.s32.totalorder %v237, %v50
    %vm251 = vcmp.eq.s32.totalorder %v237, %v51
    %vm252 = vcmp.eq.s32.totalorder %v237, %v52
    %vm253 = vcmp.eq.s32.totalorder %v237, %v53
    %v254 = vsel %vm238, 1, 0
    %v255 = vsel %vm239, 1, 0
    %v256 = vsel %vm240, 1, 0
    %v257 = vsel %vm241, 1, 0
    %v258 = vsel %vm242, 1, 0
    %v259 = vsel %vm243, 1, 0
    %v260 = vsel %vm244, 1, 0
    %v261 = vsel %vm245, 1, 0
    %v262 = vsel %vm246, 1, 0
    %v263 = vsel %vm247, 1, 0
    %v264 = vsel %vm248, 1, 0
    %v265 = vsel %vm249, 1, 0
    %v266 = vsel %vm250, 1, 0
    %v267 = vsel %vm251, 1, 0
    %v268 = vsel %vm252, 1, 0
    %v269 = vsel %vm253, 1, 0
    %v270 = vcvt.s32.f32 %v254
    %v271 = vcvt.s32.f32 %v255
    %v272 = vcvt.s32.f32 %v256
    %v273 = vcvt.s32.f32 %v257
    %v274 = vcvt.s32.f32 %v258
    %v275 = vcvt.s32.f32 %v259
    %v276 = vcvt.s32.f32 %v260
    %v277 = vcvt.s32.f32 %v261
    %v278 = vcvt.s32.f32 %v262
    %v279 = vcvt.s32.f32 %v263
    %v280 = vcvt.s32.f32 %v264
    %v281 = vcvt.s32.f32 %v265
    %v282 = vcvt.s32.f32 %v266
    %v283 = vcvt.s32.f32 %v267
    %v284 = vcvt.s32.f32 %v268
    %v285 = vcvt.s32.f32 %v269
    %v286 = vpack.c.bf16 %v271, %v270
    %v287 = vpack.c.bf16 %v273, %v272
    %v288 = vpack.c.bf16 %v275, %v274
    %v289 = vpack.c.bf16 %v277, %v276
    %v290 = vpack.c.bf16 %v279, %v278
    %v291 = vpack.c.bf16 %v281, %v280
    %v292 = vpack.c.bf16 %v283, %v282
    %v293 = vpack.c.bf16 %v285, %v284
    %v294 = vlaneseq
    %v295 = vshrl.u32 %v294, 7
    %v296 = vsub.s32 4, %v295
    %v297 = vrot.slane %v36, %v296
    %vm298 = vcmp.eq.s32.totalorder %v297, %v38
    %vm299 = vcmp.eq.s32.totalorder %v297, %v39
    %vm300 = vcmp.eq.s32.totalorder %v297, %v40
    %vm301 = vcmp.eq.s32.totalorder %v297, %v41
    %vm302 = vcmp.eq.s32.totalorder %v297, %v42
    %vm303 = vcmp.eq.s32.totalorder %v297, %v43
    %vm304 = vcmp.eq.s32.totalorder %v297, %v44
    %vm305 = vcmp.eq.s32.totalorder %v297, %v45
    %vm306 = vcmp.eq.s32.totalorder %v297, %v46
    %vm307 = vcmp.eq.s32.totalorder %v297, %v47
    %vm308 = vcmp.eq.s32.totalorder %v297, %v48
    %vm309 = vcmp.eq.s32.totalorder %v297, %v49
    %vm310 = vcmp.eq.s32.totalorder %v297, %v50
    %vm311 = vcmp.eq.s32.totalorder %v297, %v51
    %vm312 = vcmp.eq.s32.totalorder %v297, %v52
    %vm313 = vcmp.eq.s32.totalorder %v297, %v53
    %v314 = vsel %vm298, 1, 0
    %v315 = vsel %vm299, 1, 0
    %v316 = vsel %vm300, 1, 0
    %v317 = vsel %vm301, 1, 0
    %v318 = vsel %vm302, 1, 0
    %v319 = vsel %vm303, 1, 0
    %v320 = vsel %vm304, 1, 0
    %v321 = vsel %vm305, 1, 0
    %v322 = vsel %vm306, 1, 0
    %v323 = vsel %vm307, 1, 0
    %v324 = vsel %vm308, 1, 0
    %v325 = vsel %vm309, 1, 0
    %v326 = vsel %vm310, 1, 0
    %v327 = vsel %vm311, 1, 0
    %v328 = vsel %vm312, 1, 0
    %v329 = vsel %vm313, 1, 0
    %v330 = vcvt.s32.f32 %v314
    %v331 = vcvt.s32.f32 %v315
    %v332 = vcvt.s32.f32 %v316
    %v333 = vcvt.s32.f32 %v317
    %v334 = vcvt.s32.f32 %v318
    %v335 = vcvt.s32.f32 %v319
    %v336 = vcvt.s32.f32 %v320
    %v337 = vcvt.s32.f32 %v321
    %v338 = vcvt.s32.f32 %v322
    %v339 = vcvt.s32.f32 %v323
    %v340 = vcvt.s32.f32 %v324
    %v341 = vcvt.s32.f32 %v325
    %v342 = vcvt.s32.f32 %v326
    %v343 = vcvt.s32.f32 %v327
    %v344 = vcvt.s32.f32 %v328
    %v345 = vcvt.s32.f32 %v329
    %v346 = vpack.c.bf16 %v331, %v330
    %v347 = vpack.c.bf16 %v333, %v332
    %v348 = vpack.c.bf16 %v335, %v334
    %v349 = vpack.c.bf16 %v337, %v336
    %v350 = vpack.c.bf16 %v339, %v338
    %v351 = vpack.c.bf16 %v341, %v340
    %v352 = vpack.c.bf16 %v343, %v342
    %v353 = vpack.c.bf16 %v345, %v344
    %v354 = vld [vmem:[#allocation2] sm:$0xff]
    %v355 = vld [vmem:[#allocation2 + $0x8] sm:$0xff]
    %v356 = vld [vmem:[#allocation2 + $0x10] sm:$0xf]
    %v357 = vld [vmem:[#allocation2 + $0x14] sm:$0xff]
    %v358 = vld [vmem:[#allocation2 + $0x1c] sm:$0xff]
    %v359 = vld [vmem:[#allocation2 + $0x24] sm:$0xf]
    %v360 = vld [vmem:[#allocation2 + $0x28] sm:$0xff]
    %v361 = vld [vmem:[#allocation2 + $0x30] sm:$0xff]
    %v362 = vld [vmem:[#allocation2 + $0x38] sm:$0xf]
    %v363 = vld [vmem:[#allocation2 + $0x3c] sm:$0xff]
    %v364 = vld [vmem:[#allocation2 + $0x44] sm:$0xff]
    %v365 = vld [vmem:[#allocation2 + $0x4c] sm:$0xf]
    %v366 = vld [vmem:[#allocation2 + $0x50] sm:$0xff]
    %v367 = vld [vmem:[#allocation2 + $0x58] sm:$0xff]
    %v368 = vld [vmem:[#allocation2 + $0x60] sm:$0xf]
    %v369 = vld [vmem:[#allocation2 + $0x64] sm:$0xff]
    %v370 = vld [vmem:[#allocation2 + $0x6c] sm:$0xff]
    %v371 = vld [vmem:[#allocation2 + $0x74] sm:$0xf]
    %v372 = vld [vmem:[#allocation2 + $0x78] sm:$0xff]
    %v373 = vld [vmem:[#allocation2 + $0x80] sm:$0xff]
    %v374 = vld [vmem:[#allocation2 + $0x88] sm:$0xf]
    %v375 = vld [vmem:[#allocation2 + $0x8c] sm:$0xff]
    %v376 = vld [vmem:[#allocation2 + $0x94] sm:$0xff]
    %v377 = vld [vmem:[#allocation2 + $0x9c] sm:$0xf]
    %v378 = vld [vmem:[#allocation2 + $0xa0] sm:$0xff]
    %v379 = vld [vmem:[#allocation2 + $0xa8] sm:$0xff]
    %v380 = vld [vmem:[#allocation2 + $0xb0] sm:$0xf]
    %v381 = vld [vmem:[#allocation2 + $0xb4] sm:$0xff]
    %v382 = vld [vmem:[#allocation2 + $0xbc] sm:$0xff]
    %v383 = vld [vmem:[#allocation2 + $0xc4] sm:$0xf]
    %v384 = vld [vmem:[#allocation2 + $0xc8] sm:$0xff]
    %v385 = vld [vmem:[#allocation2 + $0xd0] sm:$0xff]
    %v386 = vld [vmem:[#allocation2 + $0xd8] sm:$0xf]
    %v387 = vld [vmem:[#allocation2 + $0xdc] sm:$0xff]
    %v388 = vld [vmem:[#allocation2 + $0xe4] sm:$0xff]
    %v389 = vld [vmem:[#allocation2 + $0xec] sm:$0xf]
    %v390 = vld [vmem:[#allocation2 + $0xf0] sm:$0xff]
    %v391 = vld [vmem:[#allocation2 + $0xf8] sm:$0xff]
    %v392 = vld [vmem:[#allocation2 + $0x100] sm:$0xf]
    %v393 = vld [vmem:[#allocation2 + $0x104] sm:$0xff]
    %v394 = vld [vmem:[#allocation2 + $0x10c] sm:$0xff]
    %v395 = vld [vmem:[#allocation2 + $0x114] sm:$0xf]
    %v396 = vld [vmem:[#allocation2 + $0x118] sm:$0xff]
    %v397 = vld [vmem:[#allocation2 + $0x120] sm:$0xff]
    %v398 = vld [vmem:[#allocation2 + $0x128] sm:$0xf]
    %v399 = vld [vmem:[#allocation2 + $0x12c] sm:$0xff]
    %v400 = vld [vmem:[#allocation2 + $0x134] sm:$0xff]
    %v401 = vld [vmem:[#allocation2 + $0x13c] sm:$0xf]
    %v402 = vld [vmem:[%s2] sm:$0xff]
    %v403 = vld [vmem:[%s2 + $0x8] sm:$0xff]
    %v404 = vld [vmem:[%s2 + $0x10] sm:$0xff]
    %v405 = vld [vmem:[%s2 + $0x18] sm:$0xff]
    %v406 = vld [vmem:[%s2 + $0x20] sm:$0xff]
    %v407 = vld [vmem:[%s2 + $0x28] sm:$0xff]
    %v408 = vld [vmem:[%s2 + $0x30] sm:$0xff]
    %v409 = vld [vmem:[%s2 + $0x38] sm:$0xff]
    %v410 = vld [vmem:[%s2 + $0x40] sm:$0xff]
    %v411 = vld [vmem:[%s2 + $0x48] sm:$0xff]
    %v412 = vld [vmem:[%s2 + $0x50] sm:$0xff]
    %v413 = vld [vmem:[%s2 + $0x58] sm:$0xff]
    %v414 = vld [vmem:[%s2 + $0x60] sm:$0xff]
    %v415 = vld [vmem:[%s2 + $0x68] sm:$0xff]
    %v416 = vld [vmem:[%s2 + $0x70] sm:$0xff]
    %v417 = vld [vmem:[%s2 + $0x78] sm:$0xff]
    %419 = vset.pattern.permute.xlu0 0
    %420 = vperm.xlu0 %419, %v402
    %v421 = vpop.permute.xlu0 %420
    %424 = vset.pattern.permute.xlu0 0
    %425 = vperm.xlu0 %424, %v403
    %v426 = vpop.permute.xlu0 %425
    %429 = vset.pattern.permute.xlu0 0
    %430 = vperm.xlu0 %429, %v404
    %v431 = vpop.permute.xlu0 %430
    %434 = vset.pattern.permute.xlu0 0
    %435 = vperm.xlu0 %434, %v405
    %v436 = vpop.permute.xlu0 %435
    %439 = vset.pattern.permute.xlu0 0
    %440 = vperm.xlu0 %439, %v406
    %v441 = vpop.permute.xlu0 %440
    %444 = vset.pattern.permute.xlu0 0
    %445 = vperm.xlu0 %444, %v407
    %v446 = vpop.permute.xlu0 %445
    %449 = vset.pattern.permute.xlu0 0
    %450 = vperm.xlu0 %449, %v408
    %v451 = vpop.permute.xlu0 %450
    %454 = vset.pattern.permute.xlu0 0
    %455 = vperm.xlu0 %454, %v409
    %v456 = vpop.permute.xlu0 %455
    %459 = vset.pattern.permute.xlu0 0
    %460 = vperm.xlu0 %459, %v410
    %v461 = vpop.permute.xlu0 %460
    %464 = vset.pattern.permute.xlu0 0
    %465 = vperm.xlu0 %464, %v411
    %v466 = vpop.permute.xlu0 %465
    %469 = vset.pattern.permute.xlu0 0
    %470 = vperm.xlu0 %469, %v412
    %v471 = vpop.permute.xlu0 %470
    %474 = vset.pattern.permute.xlu0 0
    %475 = vperm.xlu0 %474, %v413
    %v476 = vpop.permute.xlu0 %475
    %479 = vset.pattern.permute.xlu0 0
    %480 = vperm.xlu0 %479, %v414
    %v481 = vpop.permute.xlu0 %480
    %484 = vset.pattern.permute.xlu0 0
    %485 = vperm.xlu0 %484, %v415
    %v486 = vpop.permute.xlu0 %485
    %489 = vset.pattern.permute.xlu0 0
    %490 = vperm.xlu0 %489, %v416
    %v491 = vpop.permute.xlu0 %490
    %494 = vset.pattern.permute.xlu0 0
    %495 = vperm.xlu0 %494, %v417
    %v496 = vpop.permute.xlu0 %495
    %v546 = vunpack.c.l.b16 %v354
    %v547 = vunpack.c.h.b16 %v354
    %v548 = vunpack.c.l.b16 %v355
    %v549 = vunpack.c.h.b16 %v355
    %v550 = vunpack.c.l.b16 %v356
    %v551 = vunpack.c.l.b16 %v357
    %v552 = vunpack.c.h.b16 %v357
    %v553 = vunpack.c.l.b16 %v358
    %v554 = vunpack.c.h.b16 %v358
    %v555 = vunpack.c.l.b16 %v359
    %v556 = vunpack.c.l.b16 %v360
    %v557 = vunpack.c.h.b16 %v360
    %v558 = vunpack.c.l.b16 %v361
    %v559 = vunpack.c.h.b16 %v361
    %v560 = vunpack.c.l.b16 %v362
    %v561 = vunpack.c.l.b16 %v363
    %v562 = vunpack.c.h.b16 %v363
    %v563 = vunpack.c.l.b16 %v364
    %v564 = vunpack.c.h.b16 %v364
    %v565 = vunpack.c.l.b16 %v365
    %v566 = vunpack.c.l.b16 %v366
    %v567 = vunpack.c.h.b16 %v366
    %v568 = vunpack.c.l.b16 %v367
    %v569 = vunpack.c.h.b16 %v367
    %v570 = vunpack.c.l.b16 %v368
    %v571 = vunpack.c.l.b16 %v369
    %v572 = vunpack.c.h.b16 %v369
    %v573 = vunpack.c.l.b16 %v370
    %v574 = vunpack.c.h.b16 %v370
    %v575 = vunpack.c.l.b16 %v371
    %v576 = vunpack.c.l.b16 %v372
    %v577 = vunpack.c.h.b16 %v372
    %v578 = vunpack.c.l.b16 %v373
    %v579 = vunpack.c.h.b16 %v373
    %v580 = vunpack.c.l.b16 %v374
    %v581 = vunpack.c.l.b16 %v375
    %v582 = vunpack.c.h.b16 %v375
    %v583 = vunpack.c.l.b16 %v376
    %v584 = vunpack.c.h.b16 %v376
    %v585 = vunpack.c.l.b16 %v377
    %v586 = vunpack.c.l.b16 %v378
    %v587 = vunpack.c.h.b16 %v378
    %v588 = vunpack.c.l.b16 %v379
    %v589 = vunpack.c.h.b16 %v379
    %v590 = vunpack.c.l.b16 %v380
    %v591 = vunpack.c.l.b16 %v381
    %v592 = vunpack.c.h.b16 %v381
    %v593 = vunpack.c.l.b16 %v382
    %v594 = vunpack.c.h.b16 %v382
    %v595 = vunpack.c.l.b16 %v383
    %v596 = vunpack.c.l.b16 %v384
    %v597 = vunpack.c.h.b16 %v384
    %v598 = vunpack.c.l.b16 %v385
    %v599 = vunpack.c.h.b16 %v385
    %v600 = vunpack.c.l.b16 %v386
    %v601 = vunpack.c.l.b16 %v387
    %v602 = vunpack.c.h.b16 %v387
    %v603 = vunpack.c.l.b16 %v388
    %v604 = vunpack.c.h.b16 %v388
    %v605 = vunpack.c.l.b16 %v389
    %v606 = vunpack.c.l.b16 %v390
    %v607 = vunpack.c.h.b16 %v390
    %v608 = vunpack.c.l.b16 %v391
    %v609 = vunpack.c.h.b16 %v391
    %v610 = vunpack.c.l.b16 %v392
    %v611 = vunpack.c.l.b16 %v393
    %v612 = vunpack.c.h.b16 %v393
    %v613 = vunpack.c.l.b16 %v394
    %v614 = vunpack.c.h.b16 %v394
    %v615 = vunpack.c.l.b16 %v395
    %v616 = vunpack.c.l.b16 %v396
    %v617 = vunpack.c.h.b16 %v396
    %v618 = vunpack.c.l.b16 %v397
    %v619 = vunpack.c.h.b16 %v397
    %v620 = vunpack.c.l.b16 %v398
    %v621 = vunpack.c.l.b16 %v399
    %v622 = vunpack.c.h.b16 %v399
    %v623 = vunpack.c.l.b16 %v400
    %v624 = vunpack.c.h.b16 %v400
    %v625 = vunpack.c.l.b16 %v401
    %v626 = vpack.c.b16 %v551, %v546
    %v627 = vpack.c.b16 %v552, %v547
    %v628 = vpack.c.b16 %v553, %v548
    %v629 = vpack.c.b16 %v554, %v549
    %v630 = vpack.c.b16 %v555, %v550
    %v631 = vpack.c.b16 %v561, %v556
    %v632 = vpack.c.b16 %v562, %v557
    %v633 = vpack.c.b16 %v563, %v558
    %v634 = vpack.c.b16 %v564, %v559
    %v635 = vpack.c.b16 %v565, %v560
    %v636 = vpack.c.b16 %v571, %v566
    %v637 = vpack.c.b16 %v572, %v567
    %v638 = vpack.c.b16 %v573, %v568
    %v639 = vpack.c.b16 %v574, %v569
    %v640 = vpack.c.b16 %v575, %v570
    %v641 = vpack.c.b16 %v581, %v576
    %v642 = vpack.c.b16 %v582, %v577
    %v643 = vpack.c.b16 %v583, %v578
    %v644 = vpack.c.b16 %v584, %v579
    %v645 = vpack.c.b16 %v585, %v580
    %v646 = vpack.c.b16 %v591, %v586
    %v647 = vpack.c.b16 %v592, %v587
    %v648 = vpack.c.b16 %v593, %v588
    %v649 = vpack.c.b16 %v594, %v589
    %v650 = vpack.c.b16 %v595, %v590
    %v651 = vpack.c.b16 %v601, %v596
    %v652 = vpack.c.b16 %v602, %v597
    %v653 = vpack.c.b16 %v603, %v598
    %v654 = vpack.c.b16 %v604, %v599
    %v655 = vpack.c.b16 %v605, %v600
    %v656 = vpack.c.b16 %v611, %v606
    %v657 = vpack.c.b16 %v612, %v607
    %v658 = vpack.c.b16 %v613, %v608
    %v659 = vpack.c.b16 %v614, %v609
    %v660 = vpack.c.b16 %v615, %v610
    %v661 = vpack.c.b16 %v621, %v616
    %v662 = vpack.c.b16 %v622, %v617
    %v663 = vpack.c.b16 %v623, %v618
    %v664 = vpack.c.b16 %v624, %v619
    %v665 = vpack.c.b16 %v625, %v620
    %706 = vmatprep.subr.bf16.mxu0 0
    %707 = vmatpush1.bf16.msra.mxu0 %v106
    %708 = vmatprep.subr.bf16.mxu0 0
    %709 = vmatpush1.bf16.msra.mxu0 %v107
    %710 = vmatprep.subr.bf16.mxu0 0
    %711 = vmatpush1.bf16.msra.mxu0 %v108
    %712 = vmatprep.subr.bf16.mxu0 0
    %713 = vmatpush1.bf16.msra.mxu0 %v109
    %714 = vmatprep.subr.bf16.mxu0 0
    %715 = vmatpush1.bf16.msra.mxu0 %v110
    %716 = vmatprep.subr.bf16.mxu0 0
    %717 = vmatpush1.bf16.msra.mxu0 %v111
    %718 = vmatprep.subr.bf16.mxu0 0
    %719 = vmatpush1.bf16.msra.mxu0 %v112
    %720 = vmatprep.subr.bf16.mxu0 0
    %721 = vmatpush1.bf16.msra.mxu0 %v113
    %722 = vmatprep.subr.bf16.mxu0 0
    %723 = vmatpush1.bf16.msra.mxu0 %v166
    %724 = vmatprep.subr.bf16.mxu0 0
    %725 = vmatpush1.bf16.msra.mxu0 %v167
    %726 = vmatprep.subr.bf16.mxu0 0
    %727 = vmatpush1.bf16.msra.mxu0 %v168
    %728 = vmatprep.subr.bf16.mxu0 0
    %729 = vmatpush1.bf16.msra.mxu0 %v169
    %730 = vmatprep.subr.bf16.mxu0 0
    %731 = vmatpush1.bf16.msra.mxu0 %v170
    %732 = vmatprep.subr.bf16.mxu0 0
    %733 = vmatpush1.bf16.msra.mxu0 %v171
    %734 = vmatprep.subr.bf16.mxu0 0
    %735 = vmatpush1.bf16.msra.mxu0 %v172
    %736 = vmatprep.subr.bf16.mxu0 0
    %737 = vmatpush1.bf16.msra.mxu0 %v173
    %738 = vmatprep.mubr.bf16.mxu0 %v627
    %739 = vmatmul.mubr.bf16.gmra.mrb[0].mxu0 %v626
    %v740 = vpop.f32.mrb[0].mxu0
    %v741 = vadd.f32 %v421, %v740
    %v742 = vpop.f32.mrb[0].mxu0
    %v743 = vpop.f32.mrb[0].mxu0
    %v744 = vadd.f32 %v426, %v743
    %v745 = vpop.f32.mrb[0].mxu0
    %746 = vmatprep.mubr.bf16.mxu0 %v632
    %747 = vmatmul.mubr.bf16.gmra.mrb[0].mxu0 %v631
    %v748 = vpop.f32.mrb[0].mxu0
    %v749 = vadd.f32 %v431, %v748
    %v750 = vpop.f32.mrb[0].mxu0
    %v751 = vpop.f32.mrb[0].mxu0
    %v752 = vadd.f32 %v436, %v751
    %v753 = vpop.f32.mrb[0].mxu0
    %754 = vmatprep.mubr.bf16.mxu0 %v637
    %755 = vmatmul.mubr.bf16.gmra.mrb[0].mxu0 %v636
    %v756 = vpop.f32.mrb[0].mxu0
    %v757 = vadd.f32 %v441, %v756
    %v758 = vpop.f32.mrb[0].mxu0
    %v759 = vpop.f32.mrb[0].mxu0
    %v760 = vadd.f32 %v446, %v759
    %v761 = vpop.f32.mrb[0].mxu0
    %762 = vmatprep.mubr.bf16.mxu0 %v642
    %763 = vmatmul.mubr.bf16.gmra.mrb[0].mxu0 %v641
    %v764 = vpop.f32.mrb[0].mxu0
    %v765 = vadd.f32 %v451, %v764
    %v766 = vpop.f32.mrb[0].mxu0
    %v767 = vpop.f32.mrb[0].mxu0
    %v768 = vadd.f32 %v456, %v767
    %v769 = vpop.f32.mrb[0].mxu0
    %770 = vmatprep.mubr.bf16.mxu0 %v647
    %771 = vmatmul.mubr.bf16.gmra.mrb[0].mxu0 %v646
    %v772 = vpop.f32.mrb[0].mxu0
    %v773 = vadd.f32 %v461, %v772
    %v774 = vpop.f32.mrb[0].mxu0
    %v775 = vpop.f32.mrb[0].mxu0
    %v776 = vadd.f32 %v466, %v775
    %v777 = vpop.f32.mrb[0].mxu0
    %778 = vmatprep.mubr.bf16.mxu0 %v652
    %779 = vmatmul.mubr.bf16.gmra.mrb[0].mxu0 %v651
    %v780 = vpop.f32.mrb[0].mxu0
    %v781 = vadd.f32 %v471, %v780
    %v782 = vpop.f32.mrb[0].mxu0
    %v783 = vpop.f32.mrb[0].mxu0
    %v784 = vadd.f32 %v476, %v783
    %v785 = vpop.f32.mrb[0].mxu0
    %786 = vmatprep.mubr.bf16.mxu0 %v657
    %787 = vmatmul.mubr.bf16.gmra.mrb[0].mxu0 %v656
    %v788 = vpop.f32.mrb[0].mxu0
    %v789 = vadd.f32 %v481, %v788
    %v790 = vpop.f32.mrb[0].mxu0
    %v791 = vpop.f32.mrb[0].mxu0
    %v792 = vadd.f32 %v486, %v791
    %v793 = vpop.f32.mrb[0].mxu0
    %794 = vmatprep.mubr.bf16.mxu0 %v662
    %795 = vmatmul.mubr.bf16.gmra.mrb[0].mxu0 %v661
    %v796 = vpop.f32.mrb[0].mxu0
    %v797 = vadd.f32 %v491, %v796
    %v798 = vpop.f32.mrb[0].mxu0
    %v799 = vpop.f32.mrb[0].mxu0
    %v800 = vadd.f32 %v496, %v799
    %v801 = vpop.f32.mrb[0].mxu0
    %802 = vdwg.mxu0
    %803 = vmatprep.subr.bf16.mxu0 0
    %804 = vmatpush1.bf16.msra.mxu0 %v226
    %805 = vmatprep.subr.bf16.mxu0 0
    %806 = vmatpush1.bf16.msra.mxu0 %v227
    %807 = vmatprep.subr.bf16.mxu0 0
    %808 = vmatpush1.bf16.msra.mxu0 %v228
    %809 = vmatprep.subr.bf16.mxu0 0
    %810 = vmatpush1.bf16.msra.mxu0 %v229
    %811 = vmatprep.subr.bf16.mxu0 0
    %812 = vmatpush1.bf16.msra.mxu0 %v230
    %813 = vmatprep.subr.bf16.mxu0 0
    %814 = vmatpush1.bf16.msra.mxu0 %v231
    %815 = vmatprep.subr.bf16.mxu0 0
    %816 = vmatpush1.bf16.msra.mxu0 %v232
    %817 = vmatprep.subr.bf16.mxu0 0
    %818 = vmatpush1.bf16.msra.mxu0 %v233
    %819 = vmatprep.subr.bf16.mxu0 0
    %820 = vmatpush1.bf16.msra.mxu0 %v286
    %821 = vmatprep.subr.bf16.mxu0 0
    %822 = vmatpush1.bf16.msra.mxu0 %v287
    %823 = vmatprep.subr.bf16.mxu0 0
    %824 = vmatpush1.bf16.msra.mxu0 %v288
    %825 = vmatprep.subr.bf16.mxu0 0
    %826 = vmatpush1.bf16.msra.mxu0 %v289
    %827 = vmatprep.subr.bf16.mxu0 0
    %828 = vmatpush1.bf16.msra.mxu0 %v290
    %829 = vmatprep.subr.bf16.mxu0 0
    %830 = vmatpush1.bf16.msra.mxu0 %v291
    %831 = vmatprep.subr.bf16.mxu0 0
    %832 = vmatpush1.bf16.msra.mxu0 %v292
    %833 = vmatprep.subr.bf16.mxu0 0
    %834 = vmatpush1.bf16.msra.mxu0 %v293
    %835 = vmatprep.mubr.bf16.mxu0 %v629
    %836 = vmatmul.mubr.bf16.gmra.mrb[0].mxu0 %v628
    %v837 = vpop.f32.mrb[0].mxu0
    %v838 = vadd.f32 %v741, %v837
    %v839 = vpop.f32.mrb[0].mxu0
    %v840 = vpop.f32.mrb[0].mxu0
    %v841 = vadd.f32 %v744, %v840
    %v842 = vpop.f32.mrb[0].mxu0
    %843 = vmatprep.mubr.bf16.mxu0 %v634
    %844 = vmatmul.mubr.bf16.gmra.mrb[0].mxu0 %v633
    %v845 = vpop.f32.mrb[0].mxu0
    %v846 = vadd.f32 %v749, %v845
    %v847 = vpop.f32.mrb[0].mxu0
    %v848 = vpop.f32.mrb[0].mxu0
    %v849 = vadd.f32 %v752, %v848
    %v850 = vpop.f32.mrb[0].mxu0
    %851 = vmatprep.mubr.bf16.mxu0 %v639
    %852 = vmatmul.mubr.bf16.gmra.mrb[0].mxu0 %v638
    %v853 = vpop.f32.mrb[0].mxu0
    %v854 = vadd.f32 %v757, %v853
    %v855 = vpop.f32.mrb[0].mxu0
    %v856 = vpop.f32.mrb[0].mxu0
    %v857 = vadd.f32 %v760, %v856
    %v858 = vpop.f32.mrb[0].mxu0
    %859 = vmatprep.mubr.bf16.mxu0 %v644
    %860 = vmatmul.mubr.bf16.gmra.mrb[0].mxu0 %v643
    %v861 = vpop.f32.mrb[0].mxu0
    %v862 = vadd.f32 %v765, %v861
    %v863 = vpop.f32.mrb[0].mxu0
    %v864 = vpop.f32.mrb[0].mxu0
    %v865 = vadd.f32 %v768, %v864
    %v866 = vpop.f32.mrb[0].mxu0
    %867 = vmatprep.mubr.bf16.mxu0 %v649
    %868 = vmatmul.mubr.bf16.gmra.mrb[0].mxu0 %v648
    %v869 = vpop.f32.mrb[0].mxu0
    %v870 = vadd.f32 %v773, %v869
    %v871 = vpop.f32.mrb[0].mxu0
    %v872 = vpop.f32.mrb[0].mxu0
    %v873 = vadd.f32 %v776, %v872
    %v874 = vpop.f32.mrb[0].mxu0
    %875 = vmatprep.mubr.bf16.mxu0 %v654
    %876 = vmatmul.mubr.bf16.gmra.mrb[0].mxu0 %v653
    %v877 = vpop.f32.mrb[0].mxu0
    %v878 = vadd.f32 %v781, %v877
    %v879 = vpop.f32.mrb[0].mxu0
    %v880 = vpop.f32.mrb[0].mxu0
    %v881 = vadd.f32 %v784, %v880
    %v882 = vpop.f32.mrb[0].mxu0
    %883 = vmatprep.mubr.bf16.mxu0 %v659
    %884 = vmatmul.mubr.bf16.gmra.mrb[0].mxu0 %v658
    %v885 = vpop.f32.mrb[0].mxu0
    %v886 = vadd.f32 %v789, %v885
    %v887 = vpop.f32.mrb[0].mxu0
    %v888 = vpop.f32.mrb[0].mxu0
    %v889 = vadd.f32 %v792, %v888
    %v890 = vpop.f32.mrb[0].mxu0
    %891 = vmatprep.mubr.bf16.mxu0 %v664
    %892 = vmatmul.mubr.bf16.gmra.mrb[0].mxu0 %v663
    %v893 = vpop.f32.mrb[0].mxu0
    %v894 = vadd.f32 %v797, %v893
    %v895 = vpop.f32.mrb[0].mxu0
    %v896 = vpop.f32.mrb[0].mxu0
    %v897 = vadd.f32 %v800, %v896
    %v898 = vpop.f32.mrb[0].mxu0
    %899 = vdwg.mxu0
    %900 = vmatprep.subr.bf16.mxu0 0
    %901 = vmatpush1.bf16.msra.mxu0 %v346
    %902 = vmatprep.subr.bf16.mxu0 0
    %903 = vmatpush1.bf16.msra.mxu0 %v347
    %904 = vmatprep.subr.bf16.mxu0 0
    %905 = vmatpush1.bf16.msra.mxu0 %v348
    %906 = vmatprep.subr.bf16.mxu0 0
    %907 = vmatpush1.bf16.msra.mxu0 %v349
    %908 = vmatprep.subr.bf16.mxu0 0
    %909 = vmatpush1.bf16.msra.mxu0 %v350
    %910 = vmatprep.subr.bf16.mxu0 0
    %911 = vmatpush1.bf16.msra.mxu0 %v351
    %912 = vmatprep.subr.bf16.mxu0 0
    %913 = vmatpush1.bf16.msra.mxu0 %v352
    %914 = vmatprep.subr.bf16.mxu0 0
    %915 = vmatpush1.bf16.msra.mxu0 %v353
    %916 = vmatprep.subr.bf16.mxu0 0
    %917 = vmatpush1.bf16.msra.mxu0 0
    %918 = vmatprep.subr.bf16.mxu0 0
    %919 = vmatpush1.bf16.msra.mxu0 0
    %920 = vmatprep.subr.bf16.mxu0 0
    %921 = vmatpush1.bf16.msra.mxu0 0
    %922 = vmatprep.subr.bf16.mxu0 0
    %923 = vmatpush1.bf16.msra.mxu0 0
    %924 = vmatprep.subr.bf16.mxu0 0
    %925 = vmatpush1.bf16.msra.mxu0 0
    %926 = vmatprep.subr.bf16.mxu0 0
    %927 = vmatpush1.bf16.msra.mxu0 0
    %928 = vmatprep.subr.bf16.mxu0 0
    %929 = vmatpush1.bf16.msra.mxu0 0
    %930 = vmatprep.subr.bf16.mxu0 0
    %931 = vmatpush1.bf16.msra.mxu0 0
    %932 = vmatprep.mubr.bf16.mxu0 0
    %933 = vmatmul.mubr.bf16.gmra.mrb[0].mxu0 %v630
    %v934 = vpop.f32.mrb[0].mxu0
    %v935 = vadd.f32 %v838, %v934
    %v936 = vpop.f32.mrb[0].mxu0
    %v937 = vpop.f32.mrb[0].mxu0
    %v938 = vadd.f32 %v841, %v937
    %v939 = vpop.f32.mrb[0].mxu0
    %940 = vmatprep.mubr.bf16.mxu0 0
    %941 = vmatmul.mubr.bf16.gmra.mrb[0].mxu0 %v635
    %v942 = vpop.f32.mrb[0].mxu0
    %v943 = vadd.f32 %v846, %v942
    %v944 = vpop.f32.mrb[0].mxu0
    %v945 = vpop.f32.mrb[0].mxu0
    %v946 = vadd.f32 %v849, %v945
    %v947 = vpop.f32.mrb[0].mxu0
    %948 = vmatprep.mubr.bf16.mxu0 0
    %949 = vmatmul.mubr.bf16.gmra.mrb[0].mxu0 %v640
    %v950 = vpop.f32.mrb[0].mxu0
    %v951 = vadd.f32 %v854, %v950
    %v952 = vpop.f32.mrb[0].mxu0
    %v953 = vpop.f32.mrb[0].mxu0
    %v954 = vadd.f32 %v857, %v953
    %v955 = vpop.f32.mrb[0].mxu0
    %956 = vmatprep.mubr.bf16.mxu0 0
    %957 = vmatmul.mubr.bf16.gmra.mrb[0].mxu0 %v645
    %v958 = vpop.f32.mrb[0].mxu0
    %v959 = vadd.f32 %v862, %v958
    %v960 = vpop.f32.mrb[0].mxu0
    %v961 = vpop.f32.mrb[0].mxu0
    %v962 = vadd.f32 %v865, %v961
    %v963 = vpop.f32.mrb[0].mxu0
    %964 = vmatprep.mubr.bf16.mxu0 0
    %965 = vmatmul.mubr.bf16.gmra.mrb[0].mxu0 %v650
    %v966 = vpop.f32.mrb[0].mxu0
    %v967 = vadd.f32 %v870, %v966
    %v968 = vpop.f32.mrb[0].mxu0
    %v969 = vpop.f32.mrb[0].mxu0
    %v970 = vadd.f32 %v873, %v969
    %v971 = vpop.f32.mrb[0].mxu0
    %972 = vmatprep.mubr.bf16.mxu0 0
    %973 = vmatmul.mubr.bf16.gmra.mrb[0].mxu0 %v655
    %v974 = vpop.f32.mrb[0].mxu0
    %v975 = vadd.f32 %v878, %v974
    %v976 = vpop.f32.mrb[0].mxu0
    %v977 = vpop.f32.mrb[0].mxu0
    %v978 = vadd.f32 %v881, %v977
    %v979 = vpop.f32.mrb[0].mxu0
    %980 = vmatprep.mubr.bf16.mxu0 0
    %981 = vmatmul.mubr.bf16.gmra.mrb[0].mxu0 %v660
    %v982 = vpop.f32.mrb[0].mxu0
    %v983 = vadd.f32 %v886, %v982
    %v984 = vpop.f32.mrb[0].mxu0
    %v985 = vpop.f32.mrb[0].mxu0
    %v986 = vadd.f32 %v889, %v985
    %v987 = vpop.f32.mrb[0].mxu0
    %988 = vmatprep.mubr.bf16.mxu0 0
    %989 = vmatmul.mubr.bf16.gmra.mrb[0].mxu0 %v665
    %v990 = vpop.f32.mrb[0].mxu0
    %v991 = vadd.f32 %v894, %v990
    %v992 = vpop.f32.mrb[0].mxu0
    %v993 = vpop.f32.mrb[0].mxu0
    %v994 = vadd.f32 %v897, %v993
    %v995 = vpop.f32.mrb[0].mxu0
    %996 = vdwg.mxu0
    %v997 = vmax.f32 %v935, 0.0
    %v998 = vmax.f32 %v938, 0.0
    %v999 = vmax.f32 %v943, 0.0
    %v1000 = vmax.f32 %v946, 0.0
    %v1001 = vmax.f32 %v951, 0.0
    %v1002 = vmax.f32 %v954, 0.0
    %v1003 = vmax.f32 %v959, 0.0
    %v1004 = vmax.f32 %v962, 0.0
    %v1005 = vmax.f32 %v967, 0.0
    %v1006 = vmax.f32 %v970, 0.0
    %v1007 = vmax.f32 %v975, 0.0
    %v1008 = vmax.f32 %v978, 0.0
    %v1009 = vmax.f32 %v983, 0.0
    %v1010 = vmax.f32 %v986, 0.0
    %v1011 = vmax.f32 %v991, 0.0
    %v1012 = vmax.f32 %v994, 0.0
    %v1013 = vld [vmem:[%s3] sm:$0xf]
    %v1014 = vpack.c.bf16 %v998, %v997
    %v1015 = vpack.c.bf16 %v1000, %v999
    %v1016 = vpack.c.bf16 %v1002, %v1001
    %v1017 = vpack.c.bf16 %v1004, %v1003
    %v1018 = vpack.c.bf16 %v1006, %v1005
    %v1019 = vpack.c.bf16 %v1008, %v1007
    %v1020 = vpack.c.bf16 %v1010, %v1009
    %v1021 = vpack.c.bf16 %v1012, %v1011
    %v1022 = vld [vmem:[%s4] sm:$0xff]
    %1024 = vset.pattern.permute.xlu0 0
    %1025 = vperm.xlu0 %1024, %v1022
    %v1026 = vpop.permute.xlu0 %1025
    %1028 = vmatprep.subr.bf16.mxu0 0
    %1029 = vmatpush1.bf16.msra.mxu0 %v1014
    %1030 = vmatprep.subr.bf16.mxu0 0
    %1031 = vmatpush1.bf16.msra.mxu0 %v1015
    %1032 = vmatprep.subr.bf16.mxu0 0
    %1033 = vmatpush1.bf16.msra.mxu0 %v1016
    %1034 = vmatprep.subr.bf16.mxu0 0
    %1035 = vmatpush1.bf16.msra.mxu0 %v1017
    %1036 = vmatprep.subr.bf16.mxu0 0
    %1037 = vmatpush1.bf16.msra.mxu0 %v1018
    %1038 = vmatprep.subr.bf16.mxu0 0
    %1039 = vmatpush1.bf16.msra.mxu0 %v1019
    %1040 = vmatprep.subr.bf16.mxu0 0
    %1041 = vmatpush1.bf16.msra.mxu0 %v1020
    %1042 = vmatprep.subr.bf16.mxu0 0
    %1043 = vmatpush1.bf16.msra.mxu0 %v1021
    %1044 = vmatprep.subr.bf16.mxu0 0
    %1045 = vmatpush1.bf16.msra.mxu0 0
    %1046 = vmatprep.subr.bf16.mxu0 0
    %1047 = vmatpush1.bf16.msra.mxu0 0
    %1048 = vmatprep.subr.bf16.mxu0 0
    %1049 = vmatpush1.bf16.msra.mxu0 0
    %1050 = vmatprep.subr.bf16.mxu0 0
    %1051 = vmatpush1.bf16.msra.mxu0 0
    %1052 = vmatprep.subr.bf16.mxu0 0
    %1053 = vmatpush1.bf16.msra.mxu0 0
    %1054 = vmatprep.subr.bf16.mxu0 0
    %1055 = vmatpush1.bf16.msra.mxu0 0
    %1056 = vmatprep.subr.bf16.mxu0 0
    %1057 = vmatpush1.bf16.msra.mxu0 0
    %1058 = vmatprep.subr.bf16.mxu0 0
    %1059 = vmatpush1.bf16.msra.mxu0 0
    %1060 = vmatprep.mubr.bf16.mxu0 0
    %1061 = vmatmul.mubr.bf16.gmra.mrb[0].mxu0 %v1013
    %v1062 = vpop.f32.mrb[0].mxu0
    %v1063 = vadd.f32 %v1026, %v1062
    %v1064 = vpop.f32.mrb[0].mxu0
    %v1065 = vpop.f32.mrb[0].mxu0
    %v1066 = vpop.f32.mrb[0].mxu0
    %1067 = vdwg.mxu0
    %1068 = vst [vmem:[#allocation5] sm:$0xff] %v1063
    // Predicated region
    $region26: #{tpu_custom_call.1} parent=1 // pred_check
      _
    $region27: #{tpu_custom_call.1} parent=1 // pred_check_branch
      %1070 = sbr.rel (0) target = $region29
    $region28: #{tpu_custom_call.1} parent=1 // pred_region
      %s1072 = ssub.s32 128, 128
      %1073 = vsyncadd [#allocation4], %s1072
      %s1075 = sshll.u32 [#allocation5], 4
      %s1076 = int_to_ptr.vmem [resolvable:$true] %s1075
      %1078 = dma.vmem_to_hbm [thread:$0]  %s1076, 128, %s5, [#allocation4]
    $region29: #{tpu_custom_call.1} parent=1 // pred_fallthru
      _
    // Predicated region
    $region30: #{tpu_custom_call.1} parent=1 // pred_check
      _
    $region31: #{tpu_custom_call.1} parent=1 // pred_check_branch
      %1080 = sbr.rel (0) target = $region33
    $region32: #{tpu_custom_call.1} parent=1 // pred_region
      %1081 = dma.done [#allocation4], 128
    $region33: #{tpu_custom_call.1} parent=1 // pred_fallthru
      _
    %1082 = vsyncpa [#allocation3], 1
    %1083 = vsyncpa [#allocation4], 1

</llo_original>
